<compile_context>
chip_gen: v6e
topology: v6e:2x2x1
jax: 0.10.0
libtpu: 0.0.40
codegen_flags: <defaults>
</compile_context>

<pallas_src>
import jax
import jax.numpy as jnp
from jax.experimental import pallas as pl
from jax.experimental.pallas import tpu as pltpu

N_STATES = 4      # CartPole-v0 observation dim
N_ACTIONS = 2     # CartPole-v0 action dim
HIDDEN = 128
OUT_PAD = 128     # lane-dense output width (V in lane 0, A_j in lanes 1..N_ACTIONS)

# Row layout of the packed blob, shape (8, 2*HIDDEN), f32:
_ROW_W1 = 0               # rows 0..3, lanes 0..127   : layer1 weight (4, 128)
_ROW_B1 = N_STATES        # row 4,     lanes 0..127   : layer1 bias   (1, 128)
_ROW_W3V = N_STATES + 1   # row 5,     lanes 0..127   : won3 (value head weights, transposed)
_ROW_W3A = N_STATES + 2   # row 6,     lanes j*128..  : wun3[:, j] (advantage head weights)
_ROW_B2 = N_STATES + 3    # row 7,     lanes 0..255   : fused hidden bias [bon2 | bun2]
BLOB_ROWS = 8


def dueling_dqn_kernel(x_ref, w2_ref, blob_ref, out_ref):
    x = x_ref[...]                                                   # (TB, N_STATES) f32
    tb = x.shape[0]

    # --- layer1: h = relu(x @ W1 + b1), done as 4 VPU broadcast-FMAs (K=4; skip MXU) ---
    acc = blob_ref[_ROW_B1:_ROW_B1 + 1, 0:HIDDEN]                    # (1, HIDDEN) bias
    for i in range(N_STATES):
        acc = acc + x[:, i:i + 1] * blob_ref[i:i + 1, 0:HIDDEN]      # -> (TB, HIDDEN)
    h = jnp.maximum(acc, 0.0)                                        # (TB, HIDDEN) f32

    # --- fused value/advantage hidden layer: one bf16 MXU pass, f32 accumulate ---
    b2 = blob_ref[_ROW_B2:_ROW_B2 + 1, :]                            # (1, 2*HIDDEN) f32
    h2 = jnp.dot(h.astype(jnp.bfloat16), w2_ref[...],
                 preferred_element_type=jnp.float32) + b2
    h2 = jnp.maximum(h2, 0.0)                                        # (TB, 2*HIDDEN) f32

    # --- heads on VPU + lane reductions (no mostly-zero 256x128 matmul) ---
    h2_on = h2[:, 0:HIDDEN]                                          # value branch
    h2_un = h2[:, HIDDEN:2 * HIDDEN]                                 # advantage branch
    v_raw = jnp.sum(h2_on * blob_ref[_ROW_W3V:_ROW_W3V + 1, 0:HIDDEN],
                    axis=-1, keepdims=True)                          # (TB, 1)

    # single unmasked lane-dense (TB, 128) slab store: lane 0 = V, lanes 1..N_ACTIONS = A_j
    lanes = jax.lax.broadcasted_iota(jnp.int32, (tb, OUT_PAD), 1)
    slab = jnp.where(lanes == 0, v_raw, 0.0)
    for j in range(N_ACTIONS):
        a_j = jnp.sum(h2_un * blob_ref[_ROW_W3A:_ROW_W3A + 1, j * HIDDEN:(j + 1) * HIDDEN],
                      axis=-1, keepdims=True)                        # (TB, 1)
        slab = jnp.where(lanes == (1 + j), a_j, slab)
    out_ref[...] = slab


def pack_params(p):
    """Host-side packing: 10 parameter arrays -> (w2 bf16, blob f32, bon3, bun3)."""
    assert N_ACTIONS * HIDDEN <= 2 * HIDDEN, "advantage head rows assume N_ACTIONS <= 2"
    # fused value/advantage hidden layer, bf16 operands for a native MXU pass
    w2 = jnp.concatenate([p["won2"], p["wun2"]], axis=1).astype(jnp.bfloat16)   # (128, 256)
    b2 = jnp.concatenate([p["bon2"], p["bun2"]], axis=1)                        # (1, 256) f32

    blob = jnp.zeros((BLOB_ROWS, 2 * HIDDEN), jnp.float32)
    blob = blob.at[_ROW_W1:_ROW_W1 + N_STATES, 0:HIDDEN].set(p["w1"])
    blob = blob.at[_ROW_B1, 0:HIDDEN].set(p["b1"][0])
    blob = blob.at[_ROW_W3V, 0:HIDDEN].set(p["won3"][:, 0])
    for j in range(N_ACTIONS):
        blob = blob.at[_ROW_W3A, j * HIDDEN:(j + 1) * HIDDEN].set(p["wun3"][:, j])
    blob = blob.at[_ROW_B2, :].set(b2[0])
    # head biases are folded in the wrapper (exactly equivalent algebraically)
    return w2, blob, p["bon3"], p["bun3"]


def _round_up(n, m):
    return ((n + m - 1) // m) * m


def dueling_dqn_forward(x, packed):
    w2, blob, bon3, bun3 = packed
    B = x.shape[0]

    # batch tiling: 256-row MXU tiles for big replay batches, padded-whole-batch otherwise
    TB = 256 if B >= 256 else _round_up(B, 8)
    Bp = _round_up(B, TB)
    if Bp != B:
        x = jnp.pad(x, ((0, Bp - B), (0, 0)))

    flops = 2 * Bp * (N_STATES * HIDDEN + HIDDEN * 2 * HIDDEN + 2 * HIDDEN * (1 + N_ACTIONS))
    bytes_accessed = (Bp * N_STATES * 4 + w2.size * 2 + blob.size * 4 + Bp * OUT_PAD * 4)

    head = pl.pallas_call(
        dueling_dqn_kernel,
        out_shape=jax.ShapeDtypeStruct((Bp, OUT_PAD), jnp.float32),
        grid=(Bp // TB,),
        in_specs=[
            pl.BlockSpec((TB, N_STATES), lambda i: (i, 0)),            # x: tiled over batch
            pl.BlockSpec((HIDDEN, 2 * HIDDEN), lambda i: (0, 0)),      # w2: resident across tiles
            pl.BlockSpec((BLOB_ROWS, 2 * HIDDEN), lambda i: (0, 0)),   # blob: resident across tiles
        ],
        out_specs=pl.BlockSpec((TB, OUT_PAD), lambda i: (i, 0)),
        compiler_params=pltpu.CompilerParams(dimension_semantics=("parallel",)),
        cost_estimate=pl.CostEstimate(flops=flops, transcendentals=0,
                                      bytes_accessed=bytes_accessed),
    )(x, w2, blob)

    head = head[:B]
    v = head[:, 0:1] + bon3                       # (B, 1)
    a = head[:, 1:1 + N_ACTIONS] + bun3           # (B, N_ACTIONS)
    # global advantage mean (== torch `advantage.mean()`), computed in the wrapper so the
    # kernel stays batch-parallel without changing semantics.
    return v + a - jnp.mean(a)


def init_params(key):
    """Deterministic init matching PyTorch nn.Linear default: U(-1/sqrt(fan_in), 1/sqrt(fan_in))."""
    def linear(key, fan_in, fan_out):
        kw, kb = jax.random.split(key)
        bound = 1.0 / jnp.sqrt(float(fan_in))
        w = jax.random.uniform(kw, (fan_in, fan_out), jnp.float32, -bound, bound)
        b = jax.random.uniform(kb, (1, fan_out), jnp.float32, -bound, bound)
        return w, b

    k1, k2, k3, k4, k5 = jax.random.split(key, 5)
    w1, b1 = linear(k1, N_STATES, HIDDEN)       # layer1
    won2, bon2 = linear(k2, HIDDEN, HIDDEN)     # on2
    wun2, bun2 = linear(k3, HIDDEN, HIDDEN)     # under2
    won3, bon3 = linear(k4, HIDDEN, 1)          # on3
    wun3, bun3 = linear(k5, HIDDEN, N_ACTIONS)  # under3
    return dict(w1=w1, b1=b1, won2=won2, bon2=bon2, wun2=wun2, bun2=bun2,
                won3=won3, bon3=bon3, wun3=wun3, bun3=bun3)


def reference_forward(x, p):
    h = jax.nn.relu(x @ p["w1"] + p["b1"])
    v = jax.nn.relu(h @ p["won2"] + p["bon2"]) @ p["won3"] + p["bon3"]
    a = jax.nn.relu(h @ p["wun2"] + p["bun2"]) @ p["wun3"] + p["bun3"]
    return v + a - jnp.mean(a)


if __name__ == "__main__":
    key = jax.random.PRNGKey(0)
    kx, kp = jax.random.split(key)
    B = 8
    x = jax.random.normal(kx, (B, N_STATES), jnp.float32)
    params = init_params(kp)
    packed = pack_params(params)

    out = dueling_dqn_forward(x, packed)
    out = jax.block_until_ready(out)

    ref = reference_forward(x, params)
    assert out.shape == (B, N_ACTIONS)
    # bf16 MXU operands (f32 accumulation) -> tolerance loosened vs. the f32 reference.
    assert jnp.allclose(out, ref, atol=1e-2, rtol=1e-2), "mismatch vs JAX reference"
    print("KERNEL_OK")
</pallas_src>

<mosaic_0001>
module attributes {stable_mosaic.version = 11 : i64} {
  func.func @dueling_dqn_kernel(%arg0: i32, %arg1: memref<8x4xf32, #tpu.memory_space<vmem>>, %arg2: memref<128x256xbf16, #tpu.memory_space<vmem>>, %arg3: memref<8x256xf32, #tpu.memory_space<vmem>>, %arg4: memref<8x128xf32, #tpu.memory_space<vmem>>) attributes {dimension_semantics = [#tpu.dimension_semantics<parallel>], iteration_bounds = array<i64: 1>, scalar_prefetch = 0 : i64, scratch_operands = 0 : i64, tpu.core_type = #tpu.core_type<tc>, window_params = [{transform_indices = @transform_0, window_bounds = array<i64: 8, 4>}, {pipeline_mode = #tpu.pipeline_mode<synchronous>, transform_indices = @transform_1, window_bounds = array<i64: 128, 256>}, {pipeline_mode = #tpu.pipeline_mode<synchronous>, transform_indices = @transform_2, window_bounds = array<i64: 8, 256>}, {transform_indices = @transform_3, window_bounds = array<i64: 8, 128>}]} {
    %c0 = arith.constant 0 : index
    %c0_0 = arith.constant 0 : index
    %0 = vector.load %arg1[%c0, %c0_0] : memref<8x4xf32, #tpu.memory_space<vmem>>, vector<8x4xf32>
    %c4 = arith.constant 4 : index
    %c0_1 = arith.constant 0 : index
    %1 = vector.load %arg3[%c4, %c0_1] : memref<8x256xf32, #tpu.memory_space<vmem>>, vector<1x128xf32>
    %2 = vector.extract_strided_slice %0 {offsets = [0, 0], sizes = [8, 1], strides = [1, 1]} : vector<8x4xf32> to vector<8x1xf32>
    %c0_2 = arith.constant 0 : index
    %c0_3 = arith.constant 0 : index
    %3 = vector.load %arg3[%c0_2, %c0_3] : memref<8x256xf32, #tpu.memory_space<vmem>>, vector<1x128xf32>
    %4 = vector.broadcast %2 : vector<8x1xf32> to vector<8x128xf32>
    %5 = vector.broadcast %3 : vector<1x128xf32> to vector<8x128xf32>
    %6 = arith.mulf %4, %5 : vector<8x128xf32>
    %7 = vector.broadcast %1 : vector<1x128xf32> to vector<8x128xf32>
    %8 = arith.addf %7, %6 : vector<8x128xf32>
    %9 = vector.extract_strided_slice %0 {offsets = [0, 1], sizes = [8, 1], strides = [1, 1]} : vector<8x4xf32> to vector<8x1xf32>
    %c1 = arith.constant 1 : index
    %c0_4 = arith.constant 0 : index
    %10 = vector.load %arg3[%c1, %c0_4] : memref<8x256xf32, #tpu.memory_space<vmem>>, vector<1x128xf32>
    %11 = vector.broadcast %9 : vector<8x1xf32> to vector<8x128xf32>
    %12 = vector.broadcast %10 : vector<1x128xf32> to vector<8x128xf32>
    %13 = arith.mulf %11, %12 : vector<8x128xf32>
    %14 = arith.addf %8, %13 : vector<8x128xf32>
    %15 = vector.extract_strided_slice %0 {offsets = [0, 2], sizes = [8, 1], strides = [1, 1]} : vector<8x4xf32> to vector<8x1xf32>
    %c2 = arith.constant 2 : index
    %c0_5 = arith.constant 0 : index
    %16 = vector.load %arg3[%c2, %c0_5] : memref<8x256xf32, #tpu.memory_space<vmem>>, vector<1x128xf32>
    %17 = vector.broadcast %15 : vector<8x1xf32> to vector<8x128xf32>
    %18 = vector.broadcast %16 : vector<1x128xf32> to vector<8x128xf32>
    %19 = arith.mulf %17, %18 : vector<8x128xf32>
    %20 = arith.addf %14, %19 : vector<8x128xf32>
    %21 = vector.extract_strided_slice %0 {offsets = [0, 3], sizes = [8, 1], strides = [1, 1]} : vector<8x4xf32> to vector<8x1xf32>
    %c3 = arith.constant 3 : index
    %c0_6 = arith.constant 0 : index
    %22 = vector.load %arg3[%c3, %c0_6] : memref<8x256xf32, #tpu.memory_space<vmem>>, vector<1x128xf32>
    %23 = vector.broadcast %21 : vector<8x1xf32> to vector<8x128xf32>
    %24 = vector.broadcast %22 : vector<1x128xf32> to vector<8x128xf32>
    %25 = arith.mulf %23, %24 : vector<8x128xf32>
    %26 = arith.addf %20, %25 : vector<8x128xf32>
    %cst = arith.constant 0.000000e+00 : f32
    %27 = vector.broadcast %cst : f32 to vector<8x128xf32>
    %28 = arith.maximumf %26, %27 : vector<8x128xf32>
    %c7 = arith.constant 7 : index
    %c0_7 = arith.constant 0 : index
    %29 = vector.load %arg3[%c7, %c0_7] : memref<8x256xf32, #tpu.memory_space<vmem>>, vector<1x256xf32>
    %30 = arith.truncf %28 : vector<8x128xf32> to vector<8x128xbf16>
    %c0_8 = arith.constant 0 : index
    %c0_9 = arith.constant 0 : index
    %31 = vector.load %arg2[%c0_8, %c0_9] : memref<128x256xbf16, #tpu.memory_space<vmem>>, vector<128x256xbf16>
    %cst_10 = arith.constant dense<0.000000e+00> : vector<8x256xf32>
    %32 = tpu.matmul %30, %31, %cst_10 {dimension_numbers = #tpu.dot_dimension_numbers<[1], [0], [0], [1], [0, 0, 1, 1], [], []>} : vector<8x128xbf16>, vector<128x256xbf16>, vector<8x256xf32> -> vector<8x256xf32>
    %33 = vector.broadcast %29 : vector<1x256xf32> to vector<8x256xf32>
    %34 = arith.addf %32, %33 : vector<8x256xf32>
    %cst_11 = arith.constant 0.000000e+00 : f32
    %35 = vector.broadcast %cst_11 : f32 to vector<8x256xf32>
    %36 = arith.maximumf %34, %35 : vector<8x256xf32>
    %37 = vector.extract_strided_slice %36 {offsets = [0, 0], sizes = [8, 128], strides = [1, 1]} : vector<8x256xf32> to vector<8x128xf32>
    %38 = vector.extract_strided_slice %36 {offsets = [0, 128], sizes = [8, 128], strides = [1, 1]} : vector<8x256xf32> to vector<8x128xf32>
    %c5 = arith.constant 5 : index
    %c0_12 = arith.constant 0 : index
    %39 = vector.load %arg3[%c5, %c0_12] : memref<8x256xf32, #tpu.memory_space<vmem>>, vector<1x128xf32>
    %40 = vector.broadcast %39 : vector<1x128xf32> to vector<8x128xf32>
    %41 = arith.mulf %37, %40 : vector<8x128xf32>
    %cst_13 = arith.constant dense<0.000000e+00> : vector<8xf32>
    %42 = vector.multi_reduction <add>, %41, %cst_13 [1] : vector<8x128xf32> to vector<8xf32>
    %43 = vector.shape_cast %42 : vector<8xf32> to vector<8x1xf32>
    %44 = tpu.iota {dimensions = array<i32: 1>} : vector<8x128xi32>
    %c0_i32 = arith.constant 0 : i32
    %45 = vector.broadcast %c0_i32 : i32 to vector<8x128xi32>
    %46 = arith.cmpi eq, %44, %45 : vector<8x128xi32>
    %cst_14 = arith.constant 0.000000e+00 : f32
    %47 = vector.shape_cast %43 : vector<8x1xf32> to vector<8x1xf32>
    %48 = vector.broadcast %47 : vector<8x1xf32> to vector<8x128xf32>
    %49 = vector.broadcast %cst_14 : f32 to vector<8x128xf32>
    %50 = arith.select %46, %48, %49 : vector<8x128xi1>, vector<8x128xf32>
    %c6 = arith.constant 6 : index
    %c0_15 = arith.constant 0 : index
    %51 = vector.load %arg3[%c6, %c0_15] : memref<8x256xf32, #tpu.memory_space<vmem>>, vector<1x128xf32>
    %52 = vector.broadcast %51 : vector<1x128xf32> to vector<8x128xf32>
    %53 = arith.mulf %38, %52 : vector<8x128xf32>
    %cst_16 = arith.constant dense<0.000000e+00> : vector<8xf32>
    %54 = vector.multi_reduction <add>, %53, %cst_16 [1] : vector<8x128xf32> to vector<8xf32>
    %55 = vector.shape_cast %54 : vector<8xf32> to vector<8x1xf32>
    %c1_i32 = arith.constant 1 : i32
    %56 = vector.broadcast %c1_i32 : i32 to vector<8x128xi32>
    %57 = arith.cmpi eq, %44, %56 : vector<8x128xi32>
    %58 = vector.shape_cast %55 : vector<8x1xf32> to vector<8x1xf32>
    %59 = vector.broadcast %58 : vector<8x1xf32> to vector<8x128xf32>
    %60 = arith.select %57, %59, %50 : vector<8x128xi1>, vector<8x128xf32>
    %c6_17 = arith.constant 6 : index
    %c128 = arith.constant 128 : index
    %61 = vector.load %arg3[%c6_17, %c128] : memref<8x256xf32, #tpu.memory_space<vmem>>, vector<1x128xf32>
    %62 = vector.broadcast %61 : vector<1x128xf32> to vector<8x128xf32>
    %63 = arith.mulf %38, %62 : vector<8x128xf32>
    %cst_18 = arith.constant dense<0.000000e+00> : vector<8xf32>
    %64 = vector.multi_reduction <add>, %63, %cst_18 [1] : vector<8x128xf32> to vector<8xf32>
    %65 = vector.shape_cast %64 : vector<8xf32> to vector<8x1xf32>
    %c2_i32 = arith.constant 2 : i32
    %66 = vector.broadcast %c2_i32 : i32 to vector<8x128xi32>
    %67 = arith.cmpi eq, %44, %66 : vector<8x128xi32>
    %68 = vector.shape_cast %65 : vector<8x1xf32> to vector<8x1xf32>
    %69 = vector.broadcast %68 : vector<8x1xf32> to vector<8x128xf32>
    %70 = arith.select %67, %69, %60 : vector<8x128xi1>, vector<8x128xf32>
    %c0_19 = arith.constant 0 : index
    %c0_20 = arith.constant 0 : index
    %71 = vector.load %arg4[%c0_19, %c0_20] : memref<8x128xf32, #tpu.memory_space<vmem>>, vector<8x128xf32>
    tpu.vector_store %arg4[%c0_19, %c0_20], %70 {strides = array<i32>} : memref<8x128xf32, #tpu.memory_space<vmem>>, vector<8x128xf32>,
    return
  }
  func.func @transform_0(%arg0: i32) -> (i32, i32) {
    %c0_i32 = arith.constant 0 : i32
    %c0_i32_0 = arith.constant 0 : i32
    return %arg0, %c0_i32 : i32, i32
  }
  func.func @transform_1(%arg0: i32) -> (i32, i32) {
    %c0_i32 = arith.constant 0 : i32
    %c0_i32_0 = arith.constant 0 : i32
    %c0_i32_1 = arith.constant 0 : i32
    return %c0_i32, %c0_i32_0 : i32, i32
  }
  func.func @transform_2(%arg0: i32) -> (i32, i32) {
    %c0_i32 = arith.constant 0 : i32
    %c0_i32_0 = arith.constant 0 : i32
    %c0_i32_1 = arith.constant 0 : i32
    return %c0_i32, %c0_i32_0 : i32, i32
  }
  func.func @transform_3(%arg0: i32) -> (i32, i32) {
    %c0_i32 = arith.constant 0 : i32
    %c0_i32_0 = arith.constant 0 : i32
    return %arg0, %c0_i32 : i32, i32
  }
}

</mosaic_0001>

<llo_original>
// kernel: tpu_custom_call.1
$region0: #{tpu_custom_call.1}
  #allocation0 [shape = 'u32[]', space=smem, size = 0x4, offset = 0x4, fixed_abs, tag = 'smem constant byte address 0x4 - core index']
  #allocation1 [shape = 'u32[144,128]{1,0:T(1,128)}', space=vmem, size = 0x12000, scoped, tag = 'internal scratch']
  %s0 = inlined_call_operand.vmem [shape: f32[8,4], index: 0, kind: input, shape index: {}]
  %s1 = inlined_call_operand.hbm [shape: bf16[128,256], index: 1, kind: input, shape index: {}]
  %s2 = inlined_call_operand.hbm [shape: f32[8,256], index: 2, kind: input, shape index: {}]
  %s3 = inlined_call_operand.hbm [shape: f32[8,128], index: 3, kind: output, shape index: {}]
  %s4 = sld [smem:[#allocation0]]
  $region30: #{tpu_custom_call.1} parent=0
    _
  %s6 = ssub.s32 1, %s4
  %s7 = scalar_select 0, %s6, %s4
  $region1: #{tpu_custom_call.1} parent=0
    #allocation2 [shape = 'u8[65536]{0}', space=vmem, size = 0x10000, scoped, tag = 'input window, operand 1, single buffered']
    #allocation3 [shape = 's32[1]{0}', space=sflag, size = 0x4, scoped, tag = 'scoped memory for tpu_custom_call.1']
    #allocation4 [shape = 's32[1]{0}', space=sflag, size = 0x4, scoped, tag = 'scoped memory for tpu_custom_call.1']
    #allocation5 [shape = 'u8[8192]{0}', space=vmem, size = 0x2000, scoped, tag = 'input window, operand 2, single buffered']
    #allocation6 [shape = 's32[1]{0}', space=sflag, size = 0x4, scoped, tag = 'scoped memory for tpu_custom_call.1']
    #allocation7 [shape = 'u8[4096]{0}', space=vmem, size = 0x1000, scoped, tag = 'output window, operand 0, single buffered']
    %8 = vsyncpa [#allocation3], 0
    %9 = vsyncpa [#allocation6], 0
    %10 = vsyncpa [#allocation4], 0
    // Predicated region
    $region2: #{tpu_custom_call.1} parent=1 // pred_check
      _
    $region3: #{tpu_custom_call.1} parent=1 // pred_check_branch
      %12 = sbr.rel (0) target = $region5
    $region4: #{tpu_custom_call.1} parent=1 // pred_region
      _
    $region5: #{tpu_custom_call.1} parent=1 // pred_fallthru
      _
    // Predicated region
    $region6: #{tpu_custom_call.1} parent=1 // pred_check
      _
    $region7: #{tpu_custom_call.1} parent=1 // pred_check_branch
      %14 = sbr.rel (0) target = $region9
    $region8: #{tpu_custom_call.1} parent=1 // pred_region
      %s16 = ssub.s32 2048, 2048
      %17 = vsyncadd [#allocation3], %s16
      %s18 = sshll.u32 [#allocation2], 4
      %s19 = int_to_ptr.vmem [resolvable:$true] %s18
      %24 = dma.hbm_to_vmem [thread:$0]  %s1, 2048, %s19, [#allocation3], 128, 128, 8
    $region9: #{tpu_custom_call.1} parent=1 // pred_fallthru
      _
    // Predicated region
    $region10: #{tpu_custom_call.1} parent=1 // pred_check
      _
    $region11: #{tpu_custom_call.1} parent=1 // pred_check_branch
      %26 = sbr.rel (0) target = $region13
    $region12: #{tpu_custom_call.1} parent=1 // pred_region
      %s28 = ssub.s32 256, 256
      %29 = vsyncadd [#allocation6], %s28
      %s31 = sshll.u32 [#allocation5], 4
      %s32 = int_to_ptr.vmem [resolvable:$true] %s31
      %34 = dma.hbm_to_vmem [thread:$0]  %s2, 256, %s32, [#allocation6]
    $region13: #{tpu_custom_call.1} parent=1 // pred_fallthru
      _
    // Predicated region
    $region14: #{tpu_custom_call.1} parent=1 // pred_check
      _
    $region15: #{tpu_custom_call.1} parent=1 // pred_check_branch
      %36 = sbr.rel (0) target = $region17
    $region16: #{tpu_custom_call.1} parent=1 // pred_region
      %37 = dma.done [#allocation3], 2048
    $region17: #{tpu_custom_call.1} parent=1 // pred_fallthru
      _
    // Predicated region
    $region18: #{tpu_custom_call.1} parent=1 // pred_check
      _
    $region19: #{tpu_custom_call.1} parent=1 // pred_check_branch
      %39 = sbr.rel (0) target = $region21
    $region20: #{tpu_custom_call.1} parent=1 // pred_region
      %40 = dma.done [#allocation6], 256
    $region21: #{tpu_custom_call.1} parent=1 // pred_fallthru
      _
    %v42 = vld [vmem:[%s0] sm:$0xff]
    %v43 = vld [vmem:[#allocation5 + $0x4] ss:$0 sm:$0xff]
    %v44 = vld [vmem:[#allocation5] ss:$0 sm:$0xff]
    %46 = vset.pattern.permute.xlu0 0
    %47 = vperm.xlu0 %46, %v42
    %v48 = vpop.permute.xlu0 %47
    %v50 = vmul.f32 %v48, %v44
    %v51 = vadd.f32 %v43, %v50
    %v52 = vld [vmem:[#allocation5 + $0x1] ss:$0 sm:$0xff]
    %53 = vset.pattern.permute.xlu0 1
    %54 = vperm.xlu0 %53, %v42
    %v55 = vpop.permute.xlu0 %54
    %v57 = vmul.f32 %v55, %v52
    %v58 = vadd.f32 %v51, %v57
    %v59 = vld [vmem:[#allocation5 + $0x2] ss:$0 sm:$0xff]
    %60 = vset.pattern.permute.xlu0 2
    %61 = vperm.xlu0 %60, %v42
    %v62 = vpop.permute.xlu0 %61
    %v64 = vmul.f32 %v62, %v59
    %v65 = vadd.f32 %v58, %v64
    %v66 = vld [vmem:[#allocation5 + $0x3] ss:$0 sm:$0xff]
    %67 = vset.pattern.permute.xlu0 3
    %68 = vperm.xlu0 %67, %v42
    %v69 = vpop.permute.xlu0 %68
    %v71 = vmul.f32 %v69, %v66
    %v72 = vadd.f32 %v65, %v71
    %v73 = vmax.f32 %v72, 0.0
    %s74 = scalar_lea.vmem [#allocation5], 7
    %v75 = vld [vmem:[%s74] ss:$8 sm:$0x3]
    %v76 = vpack.c.bf16 %v73, %v73
    %v77 = vld [vmem:[#allocation2] sm:$0xff]
    %v78 = vld [vmem:[#allocation2 + $0x8] sm:$0xff]
    %v79 = vld [vmem:[#allocation2 + $0x10] sm:$0xff]
    %v80 = vld [vmem:[#allocation2 + $0x18] sm:$0xff]
    %v81 = vld [vmem:[#allocation2 + $0x20] sm:$0xff]
    %v82 = vld [vmem:[#allocation2 + $0x28] sm:$0xff]
    %v83 = vld [vmem:[#allocation2 + $0x30] sm:$0xff]
    %v84 = vld [vmem:[#allocation2 + $0x38] sm:$0xff]
    %v85 = vld [vmem:[#allocation2 + $0x40] sm:$0xff]
    %v86 = vld [vmem:[#allocation2 + $0x48] sm:$0xff]
    %v87 = vld [vmem:[#allocation2 + $0x50] sm:$0xff]
    %v88 = vld [vmem:[#allocation2 + $0x58] sm:$0xff]
    %v89 = vld [vmem:[#allocation2 + $0x60] sm:$0xff]
    %v90 = vld [vmem:[#allocation2 + $0x68] sm:$0xff]
    %v91 = vld [vmem:[#allocation2 + $0x70] sm:$0xff]
    %v92 = vld [vmem:[#allocation2 + $0x78] sm:$0xff]
    %v94 = vlaneseq
    %v95 = vshrl.u32 %v94, 7
    %v96 = vsub.s32 0, %v95
    %v97 = vrot.slane %v75, %v96
    %v98 = vlaneseq
    %v99 = vshrl.u32 %v98, 7
    %v100 = vsub.s32 1, %v99
    %v101 = vrot.slane %v75, %v100
    %v120 = vunpack.c.l.b16 %v77
    %v121 = vunpack.c.h.b16 %v77
    %v122 = vunpack.c.l.b16 %v78
    %v123 = vunpack.c.h.b16 %v78
    %v124 = vunpack.c.l.b16 %v79
    %v125 = vunpack.c.h.b16 %v79
    %v126 = vunpack.c.l.b16 %v80
    %v127 = vunpack.c.h.b16 %v80
    %v128 = vunpack.c.l.b16 %v81
    %v129 = vunpack.c.h.b16 %v81
    %v130 = vunpack.c.l.b16 %v82
    %v131 = vunpack.c.h.b16 %v82
    %v132 = vunpack.c.l.b16 %v83
    %v133 = vunpack.c.h.b16 %v83
    %v134 = vunpack.c.l.b16 %v84
    %v135 = vunpack.c.h.b16 %v84
    %v136 = vunpack.c.l.b16 %v85
    %v137 = vunpack.c.h.b16 %v85
    %v138 = vunpack.c.l.b16 %v86
    %v139 = vunpack.c.h.b16 %v86
    %v140 = vunpack.c.l.b16 %v87
    %v141 = vunpack.c.h.b16 %v87
    %v142 = vunpack.c.l.b16 %v88
    %v143 = vunpack.c.h.b16 %v88
    %v144 = vunpack.c.l.b16 %v89
    %v145 = vunpack.c.h.b16 %v89
    %v146 = vunpack.c.l.b16 %v90
    %v147 = vunpack.c.h.b16 %v90
    %v148 = vunpack.c.l.b16 %v91
    %v149 = vunpack.c.h.b16 %v91
    %v150 = vunpack.c.l.b16 %v92
    %v151 = vunpack.c.h.b16 %v92
    %v152 = vpack.c.b16 %v122, %v120
    %v153 = vpack.c.b16 %v123, %v121
    %v154 = vpack.c.b16 %v126, %v124
    %v155 = vpack.c.b16 %v127, %v125
    %v156 = vpack.c.b16 %v130, %v128
    %v157 = vpack.c.b16 %v131, %v129
    %v158 = vpack.c.b16 %v134, %v132
    %v159 = vpack.c.b16 %v135, %v133
    %v160 = vpack.c.b16 %v138, %v136
    %v161 = vpack.c.b16 %v139, %v137
    %v162 = vpack.c.b16 %v142, %v140
    %v163 = vpack.c.b16 %v143, %v141
    %v164 = vpack.c.b16 %v146, %v144
    %v165 = vpack.c.b16 %v147, %v145
    %v166 = vpack.c.b16 %v150, %v148
    %v167 = vpack.c.b16 %v151, %v149
    %184 = vmatprep.subr.bf16.mxu0 %v167
    %185 = vmatpush1.bf16.msra.mxu0 %v166
    %186 = vmatprep.subr.bf16.mxu0 %v165
    %187 = vmatpush1.bf16.msra.mxu0 %v164
    %188 = vmatprep.subr.bf16.mxu0 %v163
    %189 = vmatpush1.bf16.msra.mxu0 %v162
    %190 = vmatprep.subr.bf16.mxu0 %v161
    %191 = vmatpush1.bf16.msra.mxu0 %v160
    %192 = vmatprep.subr.bf16.mxu0 %v159
    %193 = vmatpush1.bf16.msra.mxu0 %v158
    %194 = vmatprep.subr.bf16.mxu0 %v157
    %195 = vmatpush1.bf16.msra.mxu0 %v156
    %196 = vmatprep.subr.bf16.mxu0 %v155
    %197 = vmatpush1.bf16.msra.mxu0 %v154
    %198 = vmatprep.subr.bf16.mxu0 %v153
    %199 = vmatpush1.bf16.msra.mxu0 %v152
    %200 = vmatprep.subr.bf16.mxu0 0
    %201 = vmatpush2.bf16.msra.mxu0 0
    %202 = vmatprep.subr.bf16.mxu0 0
    %203 = vmatpush2.bf16.msra.mxu0 0
    %204 = vmatprep.subr.bf16.mxu0 0
    %205 = vmatpush2.bf16.msra.mxu0 0
    %206 = vmatprep.subr.bf16.mxu0 0
    %207 = vmatpush2.bf16.msra.mxu0 0
    %208 = vmatprep.subr.bf16.mxu0 0
    %209 = vmatpush2.bf16.msra.mxu0 0
    %210 = vmatprep.subr.bf16.mxu0 0
    %211 = vmatpush2.bf16.msra.mxu0 0
    %212 = vmatprep.subr.bf16.mxu0 0
    %213 = vmatpush2.bf16.msra.mxu0 0
    %214 = vmatprep.subr.bf16.mxu0 0
    %215 = vmatpush2.bf16.msra.mxu0 0
    %216 = vmatprep.mubr.bf16.mxu0 0
    %217 = vmatmul.mubr.bf16.gmra.mxu0 %v76
    %v218 = vpop.f32.mrf.mxu0
    %v219 = vadd.f32 %v97, %v218
    %v220 = vpop.f32.mrf.mxu0
    %v221 = vadd.f32 %v101, %v220
    %v222 = vpop.f32.mrf.mxu0
    %v223 = vpop.f32.mrf.mxu0
    %224 = vdwg.mxu0
    %v225 = vmax.f32 %v219, 0.0
    %v226 = vmax.f32 %v221, 0.0
    %v227 = vld [vmem:[#allocation5 + $0x5] ss:$0 sm:$0xff]
    %v228 = vmul.f32 %v225, %v227
    %229 = vadd.xlane.f32.xlu0 %v228
    %v230 = vpop.xlane.xlu0 %229
    %v231 = vlaneseq
    %v232 = vand.u32 %v231, 127
    %vm233 = vcmp.eq.s32.totalorder %v232, 0
    %v234 = vsel %vm233, %v230, 0.0
    %v235 = vld [vmem:[#allocation5 + $0x6] ss:$0 sm:$0xff]
    %v236 = vmul.f32 %v226, %v235
    %237 = vadd.xlane.f32.xlu0 %v236
    %v238 = vpop.xlane.xlu0 %237
    %vm239 = vcmp.eq.s32.totalorder %v232, 1
    %v240 = vsel %vm239, %v238, %v234
    %v241 = vld [vmem:[#allocation5 + $0xe] ss:$0 sm:$0xff]
    %v242 = vmul.f32 %v226, %v241
    %243 = vadd.xlane.f32.xlu0 %v242
    %v244 = vpop.xlane.xlu0 %243
    %vm245 = vcmp.eq.s32.totalorder %v232, 2
    %v246 = vsel %vm245, %v244, %v240
    %247 = vst [vmem:[#allocation7] sm:$0xff] %v246
    // Predicated region
    $region22: #{tpu_custom_call.1} parent=1 // pred_check
      _
    $region23: #{tpu_custom_call.1} parent=1 // pred_check_branch
      %249 = sbr.rel (0) target = $region25
    $region24: #{tpu_custom_call.1} parent=1 // pred_region
      %s251 = ssub.s32 128, 128
      %252 = vsyncadd [#allocation4], %s251
      %s254 = sshll.u32 [#allocation7], 4
      %s255 = int_to_ptr.vmem [resolvable:$true] %s254
      %257 = dma.vmem_to_hbm [thread:$0]  %s255, 128, %s3, [#allocation4]
    $region25: #{tpu_custom_call.1} parent=1 // pred_fallthru
      _
    // Predicated region
    $region26: #{tpu_custom_call.1} parent=1 // pred_check
      _
    $region27: #{tpu_custom_call.1} parent=1 // pred_check_branch
      %259 = sbr.rel (0) target = $region29
    $region28: #{tpu_custom_call.1} parent=1 // pred_region
      %260 = dma.done [#allocation4], 128
    $region29: #{tpu_custom_call.1} parent=1 // pred_fallthru
      _
    %261 = vsyncpa [#allocation3], 1
    %262 = vsyncpa [#allocation6], 1
    %263 = vsyncpa [#allocation4], 1

</llo_original>
